<compile_context>
chip_gen: v6e
topology: v6e:2x2x1
jax: 0.10.0
libtpu: 0.0.40
codegen_flags: <defaults>
</compile_context>

<pallas_src>
import numpy as np
import jax
import jax.numpy as jnp
from jax.experimental import pallas as pl
from jax.experimental.pallas import tpu as pltpu


def _round_up(x: int, m: int) -> int:
    return (x + m - 1) // m * m


def _make_gcc_kernel(tb, fr, fi, eps, dot_dtype, use_rsqrt):
    """Build the GCC-PHAT kernel body.

    tb : batch rows per grid step (the input tile is 2*tb rows: x stacked over y
         in the wrapper).
    fr : lane width of the packed real spectrum (bins 0..F-1, padded to 128).
    fi : lane width of the packed imag spectrum (bins 0..F-2; DC/Nyquist imag
         parts are identically zero and omitted), padded to 128.
    eps: PHAT epsilon as a Python float -> compile-time literal (NOT a captured
         traced constant, which is what broke the previous version).
    """
    eps = float(eps)
    has_hi = fr > fi  # real-only "hi" lanes (Nyquist bin + zero padding)

    def gcc_phat_kernel(xy_ref, cb_ref, ibr_ref, ibi_ref, out_ref):
        # Forward real-DFT for x and y in ONE matmul (pre-stacked on sublanes).
        XY = jnp.dot(xy_ref[...], cb_ref[...], preferred_element_type=jnp.float32)
        xr = XY[:tb, :fr]
        yr = XY[tb:, :fr]
        xi = XY[:tb, fr:]          # width fi
        yi = XY[tb:, fr:]

        # Gxy = X * conj(Y), in lane-aligned lo (re+im) / hi (re-only) blocks.
        xr_lo = xr[:, :fi]
        yr_lo = yr[:, :fi]
        gr_lo = xr_lo * yr_lo + xi * yi
        gi_lo = xi * yr_lo - xr_lo * yi

        # PHAT weighting phi = 1 / (|Gxy| + eps); approx reciprocal -> EUP slot.
        if use_rsqrt:
            phi_lo = jax.lax.rsqrt(gr_lo * gr_lo + gi_lo * gi_lo + eps * eps)
        else:
            mag_lo = jnp.sqrt(gr_lo * gr_lo + gi_lo * gi_lo)
            phi_lo = pl.reciprocal(mag_lo + eps, approx=True)
        rr_lo = (gr_lo * phi_lo).astype(dot_dtype)
        ri_lo = (gi_lo * phi_lo).astype(dot_dtype)

        # Inverse real-DFT over the output lag window, accumulated across
        # separate dots (no lane concat, no extra VMEM staging buffer).
        acc = jnp.dot(rr_lo, ibr_ref[:fi, :], preferred_element_type=jnp.float32)
        acc = acc + jnp.dot(ri_lo, ibi_ref[...], preferred_element_type=jnp.float32)
        if has_hi:
            gr_hi = xr[:, fi:] * yr[:, fi:]        # imag part exactly zero here
            if use_rsqrt:
                phi_hi = jax.lax.rsqrt(gr_hi * gr_hi + eps * eps)
            else:
                phi_hi = pl.reciprocal(jnp.abs(gr_hi) + eps, approx=True)
            rr_hi = (gr_hi * phi_hi).astype(dot_dtype)
            acc = acc + jnp.dot(rr_hi, ibr_ref[fi:, :],
                                preferred_element_type=jnp.float32)
        out_ref[...] = acc

    return gcc_phat_kernel


def gcc_phat(x, y, max_tau=None, epsilon=0.001, *, block_b=128,
             dot_dtype=jnp.bfloat16, use_rsqrt=False):
    """Pallas GCC matching GCC.forward with filt='phat', dim=2, beta=None.

    dot_dtype: MXU operand dtype. bf16 (default) is the native MXU dtype on
      v5e/v6e/v7x and halves x/y DMA + basis VMEM; accumulation is always f32.
      Pass jnp.float32 for maximum fidelity.
    use_rsqrt: fuse magnitude+reciprocal into one rsqrt (halves EUP traffic) at
      the cost of slightly different epsilon semantics; off by default.
    """
    x = jnp.asarray(x, jnp.float32)
    y = jnp.asarray(y, jnp.float32)
    B, L = x.shape
    assert y.shape == (B, L), "fused GCC kernel assumes equal-length x and y"

    n = 2 * L                                     # FFT length (even)
    F = n // 2 + 1                                # rfft bins
    max_shift = n // 2
    if max_tau is not None:
        max_shift = int(min(int(max_tau), max_shift))
    T = 2 * max_shift + 1                         # output lags

    # Packed / padded frequency widths (all multiples of 128 -> aligned slices).
    Fr = _round_up(F, 128)                        # real bins 0..F-1
    Fi = _round_up(F - 1, 128)                    # imag bins 0..F-2 (Nyquist dropped)
    W = Fr + Fi                                   # forward-basis width
    Tp = _round_up(T, 128)                        # lane-dense output width

    # Batch tiling: multiple of 8 (sublane), capped by block_b; when B >= 16
    # keep >= 2 grid steps so the parallel axis can shard across v7x's 2 TCs.
    TB = _round_up(max(1, min(block_b, B)), 8)
    if B >= 16:
        TB = min(TB, max(8, _round_up(-(-B // 2), 8)))
    Bp = _round_up(B, TB)
    G = Bp // TB

    # ---- Forward real-DFT basis: [cos(bins 0..F-1) | -sin(bins 0..F-2)] ----
    k = np.arange(L, dtype=np.float64)[:, None]
    f_re = np.arange(F, dtype=np.float64)[None, :]
    f_im = np.arange(F - 1, dtype=np.float64)[None, :]
    cb_np = np.zeros((L, W), np.float64)
    cb_np[:, :F] = np.cos(2.0 * np.pi * k * f_re / n)
    cb_np[:, Fr:Fr + F - 1] = -np.sin(2.0 * np.pi * k * f_im / n)
    cb = jnp.asarray(cb_np, dot_dtype)

    # ---- Inverse real-DFT bases evaluated only at the output lag indices ----
    # t = [n-max_shift .. n-1, 0 .. max_shift]  (== cat(cc[:,-ms:], cc[:,:ms+1]))
    t_idx = np.concatenate(
        [np.arange(n - max_shift, n), np.arange(0, max_shift + 1)]
    ).astype(np.float64)[None, :]                 # (1, T)
    fcol_r = np.arange(F, dtype=np.float64)[:, None]
    w_r = np.full((F, 1), 2.0)
    w_r[0, 0] = 1.0
    w_r[F - 1, 0] = 1.0                           # Nyquist (n even)
    ibr_np = np.zeros((Fr, Tp), np.float64)
    ibr_np[:F, :T] = w_r * np.cos(2.0 * np.pi * fcol_r * t_idx / n) / n

    fcol_i = np.arange(F - 1, dtype=np.float64)[:, None]
    w_i = np.full((F - 1, 1), 2.0)
    w_i[0, 0] = 1.0                               # DC row is zero anyway
    ibi_np = np.zeros((Fi, Tp), np.float64)
    ibi_np[:F - 1, :T] = -w_i * np.sin(2.0 * np.pi * fcol_i * t_idx / n) / n

    ibr = jnp.asarray(ibr_np, dot_dtype)
    ibi = jnp.asarray(ibi_np, dot_dtype)

    # ---- Pre-stack x over y per grid step (no in-kernel concat) + bf16 cast ----
    if Bp != B:
        x = jnp.pad(x, ((0, Bp - B), (0, 0)))
        y = jnp.pad(y, ((0, Bp - B), (0, 0)))
    xy = jnp.concatenate([x.reshape(G, TB, L), y.reshape(G, TB, L)], axis=1)
    xy = xy.reshape(G * 2 * TB, L).astype(dot_dtype)

    kernel = _make_gcc_kernel(TB, Fr, Fi, epsilon, dot_dtype, use_rsqrt)

    item = jnp.dtype(dot_dtype).itemsize
    # Rough VMEM budget (double-buffered tiles + resident bases + f32 temps);
    # only pass an explicit limit when the default scoped window is too small.
    vmem_bytes = (2 * (2 * TB * L * item)         # xy tile (double-buffered)
                  + 2 * (TB * Tp * 4)             # out tile (double-buffered)
                  + 2 * (L * W * item)            # forward basis
                  + 2 * ((Fr + Fi) * Tp * item)   # inverse bases
                  + 6 * (2 * TB * W * 4))         # f32 intermediates headroom
    cp_kwargs = dict(dimension_semantics=("parallel",))
    if vmem_bytes > 30 * 1024 * 1024:
        cp_kwargs["vmem_limit_bytes"] = int(min(vmem_bytes + (8 << 20), 120 << 20))

    out = pl.pallas_call(
        kernel,
        out_shape=jax.ShapeDtypeStruct((Bp, Tp), jnp.float32),
        grid=(G,),
        in_specs=[
            pl.BlockSpec((2 * TB, L), lambda i: (i, 0)),    # stacked x/y tile
            pl.BlockSpec((L, W), lambda i: (0, 0)),         # fwd basis (resident)
            pl.BlockSpec((Fr, Tp), lambda i: (0, 0)),       # inv basis (real rows)
            pl.BlockSpec((Fi, Tp), lambda i: (0, 0)),       # inv basis (imag rows)
        ],
        out_specs=pl.BlockSpec((TB, Tp), lambda i: (i, 0)),
        compiler_params=pltpu.CompilerParams(**cp_kwargs),
        cost_estimate=pl.CostEstimate(
            flops=int(2 * (2 * Bp) * L * W + 2 * Bp * W * Tp),
            transcendentals=int(2 * Bp * Fr),
            bytes_accessed=int(2 * Bp * L * item + Bp * Tp * 4
                               + L * W * item + (Fr + Fi) * Tp * item),
        ),
    )(xy, cb, ibr, ibi)
    return out[:B, :T]


def gcc_phat_reference(x, y, max_tau=None, epsilon=0.001):
    """Pure-JAX reference mirroring the PyTorch module (filt='phat', dim=2)."""
    n = x.shape[-1] + y.shape[-1]
    X = jnp.fft.rfft(x, n=n)
    Y = jnp.fft.rfft(y, n=n)
    Gxy = X * jnp.conj(Y)
    phi = 1.0 / (jnp.abs(Gxy) + epsilon)
    cc = jnp.fft.irfft(Gxy * phi, n=n)
    max_shift = n // 2
    if max_tau is not None:
        max_shift = int(min(int(max_tau), max_shift))
    return jnp.concatenate([cc[:, -max_shift:], cc[:, : max_shift + 1]], axis=-1)


if __name__ == "__main__":
    key = jax.random.PRNGKey(0)
    kx, ky = jax.random.split(key)

    # 16 signal pairs, 128 samples each (small, but yields a 2-step grid so the
    # parallel batch axis can occupy both v7x TensorCores), max_tau=32.
    B, L, max_tau = 16, 128, 32
    x = jax.random.normal(kx, (B, L), dtype=jnp.float32)
    y = jnp.roll(x, 5, axis=-1) + 0.1 * jax.random.normal(ky, (B, L), jnp.float32)

    ref = jax.block_until_ready(
        gcc_phat_reference(x, y, max_tau=max_tau, epsilon=0.001))

    # Default path: bf16 MXU operands, f32 accumulation.
    out = jax.block_until_ready(gcc_phat(x, y, max_tau=max_tau, epsilon=0.001))
    assert out.shape == (B, 2 * max_tau + 1), out.shape
    np.testing.assert_allclose(np.asarray(out), np.asarray(ref),
                               atol=3e-2, rtol=3e-2)

    # f32 MXU operands.
    out_f32 = jax.block_until_ready(
        gcc_phat(x, y, max_tau=max_tau, epsilon=0.001, dot_dtype=jnp.float32))
    np.testing.assert_allclose(np.asarray(out_f32), np.asarray(ref),
                               atol=2e-2, rtol=2e-2)

    # 4-mic style usage: 4 pairs (batch padded to one sublane tile), full lag
    # window (max_tau=None), and a length exercising the no-Nyquist-hi path.
    B2, L2 = 4, 96
    x2 = jax.random.normal(jax.random.PRNGKey(1), (B2, L2), dtype=jnp.float32)
    y2 = jnp.roll(x2, 3, axis=-1) + 0.1 * jax.random.normal(
        jax.random.PRNGKey(2), (B2, L2), jnp.float32)
    ref2 = jax.block_until_ready(
        gcc_phat_reference(x2, y2, max_tau=None, epsilon=0.001))
    out2 = jax.block_until_ready(gcc_phat(x2, y2, max_tau=None, epsilon=0.001))
    assert out2.shape == ref2.shape, (out2.shape, ref2.shape)
    np.testing.assert_allclose(np.asarray(out2), np.asarray(ref2),
                               atol=3e-2, rtol=3e-2)

    print("KERNEL_OK")
</pallas_src>

<mosaic_0001>
module attributes {stable_mosaic.version = 11 : i64} {
  func.func @gcc_phat_kernel(%arg0: i32, %arg1: memref<16x128xbf16, #tpu.memory_space<vmem>>, %arg2: memref<128x384xbf16, #tpu.memory_space<vmem>>, %arg3: memref<256x128xbf16, #tpu.memory_space<vmem>>, %arg4: memref<128x128xbf16, #tpu.memory_space<vmem>>, %arg5: memref<8x128xf32, #tpu.memory_space<vmem>>) attributes {dimension_semantics = [#tpu.dimension_semantics<parallel>], iteration_bounds = array<i64: 2>, scalar_prefetch = 0 : i64, scratch_operands = 0 : i64, tpu.core_type = #tpu.core_type<tc>, window_params = [{transform_indices = @transform_0, window_bounds = array<i64: 16, 128>}, {pipeline_mode = #tpu.pipeline_mode<synchronous>, transform_indices = @transform_1, window_bounds = array<i64: 128, 384>}, {pipeline_mode = #tpu.pipeline_mode<synchronous>, transform_indices = @transform_2, window_bounds = array<i64: 256, 128>}, {pipeline_mode = #tpu.pipeline_mode<synchronous>, transform_indices = @transform_3, window_bounds = array<i64: 128, 128>}, {transform_indices = @transform_4, window_bounds = array<i64: 8, 128>}]} {
    %c0 = arith.constant 0 : index
    %c0_0 = arith.constant 0 : index
    %0 = vector.load %arg1[%c0, %c0_0] : memref<16x128xbf16, #tpu.memory_space<vmem>>, vector<16x128xbf16>
    %c0_1 = arith.constant 0 : index
    %c0_2 = arith.constant 0 : index
    %1 = vector.load %arg2[%c0_1, %c0_2] : memref<128x384xbf16, #tpu.memory_space<vmem>>, vector<128x384xbf16>
    %cst = arith.constant dense<0.000000e+00> : vector<16x384xf32>
    %2 = tpu.matmul %0, %1, %cst {dimension_numbers = #tpu.dot_dimension_numbers<[1], [0], [0], [1], [0, 0, 1, 1], [], []>} : vector<16x128xbf16>, vector<128x384xbf16>, vector<16x384xf32> -> vector<16x384xf32>
    %3 = vector.extract_strided_slice %2 {offsets = [0, 0], sizes = [8, 256], strides = [1, 1]} : vector<16x384xf32> to vector<8x256xf32>
    %4 = vector.extract_strided_slice %2 {offsets = [8, 0], sizes = [8, 256], strides = [1, 1]} : vector<16x384xf32> to vector<8x256xf32>
    %5 = vector.extract_strided_slice %2 {offsets = [0, 256], sizes = [8, 128], strides = [1, 1]} : vector<16x384xf32> to vector<8x128xf32>
    %6 = vector.extract_strided_slice %2 {offsets = [8, 256], sizes = [8, 128], strides = [1, 1]} : vector<16x384xf32> to vector<8x128xf32>
    %7 = vector.extract_strided_slice %3 {offsets = [0, 0], sizes = [8, 128], strides = [1, 1]} : vector<8x256xf32> to vector<8x128xf32>
    %8 = vector.extract_strided_slice %4 {offsets = [0, 0], sizes = [8, 128], strides = [1, 1]} : vector<8x256xf32> to vector<8x128xf32>
    %9 = arith.mulf %7, %8 : vector<8x128xf32>
    %10 = arith.mulf %5, %6 : vector<8x128xf32>
    %11 = arith.addf %9, %10 : vector<8x128xf32>
    %12 = arith.mulf %5, %8 : vector<8x128xf32>
    %13 = arith.mulf %7, %6 : vector<8x128xf32>
    %14 = arith.subf %12, %13 : vector<8x128xf32>
    %15 = arith.mulf %11, %11 : vector<8x128xf32>
    %16 = arith.mulf %14, %14 : vector<8x128xf32>
    %17 = arith.addf %15, %16 : vector<8x128xf32>
    %18 = math.sqrt %17 : vector<8x128xf32>
    %cst_3 = arith.constant 1.000000e-03 : f32
    %19 = vector.broadcast %cst_3 : f32 to vector<8x128xf32>
    %20 = arith.addf %18, %19 : vector<8x128xf32>
    %21 = tpu.reciprocal %20 {approx = true} : vector<8x128xf32> -> vector<8x128xf32>
    %22 = arith.mulf %11, %21 : vector<8x128xf32>
    %23 = arith.truncf %22 : vector<8x128xf32> to vector<8x128xbf16>
    %24 = arith.mulf %14, %21 : vector<8x128xf32>
    %25 = arith.truncf %24 : vector<8x128xf32> to vector<8x128xbf16>
    %c0_4 = arith.constant 0 : index
    %c0_5 = arith.constant 0 : index
    %26 = vector.load %arg3[%c0_4, %c0_5] : memref<256x128xbf16, #tpu.memory_space<vmem>>, vector<128x128xbf16>
    %cst_6 = arith.constant dense<0.000000e+00> : vector<8x128xf32>
    %27 = tpu.matmul %23, %26, %cst_6 {dimension_numbers = #tpu.dot_dimension_numbers<[1], [0], [0], [1], [0, 0, 1, 1], [], []>} : vector<8x128xbf16>, vector<128x128xbf16>, vector<8x128xf32> -> vector<8x128xf32>
    %c0_7 = arith.constant 0 : index
    %c0_8 = arith.constant 0 : index
    %28 = vector.load %arg4[%c0_7, %c0_8] : memref<128x128xbf16, #tpu.memory_space<vmem>>, vector<128x128xbf16>
    %cst_9 = arith.constant dense<0.000000e+00> : vector<8x128xf32>
    %29 = tpu.matmul %25, %28, %cst_9 {dimension_numbers = #tpu.dot_dimension_numbers<[1], [0], [0], [1], [0, 0, 1, 1], [], []>} : vector<8x128xbf16>, vector<128x128xbf16>, vector<8x128xf32> -> vector<8x128xf32>
    %30 = arith.addf %27, %29 : vector<8x128xf32>
    %31 = vector.extract_strided_slice %3 {offsets = [0, 128], sizes = [8, 128], strides = [1, 1]} : vector<8x256xf32> to vector<8x128xf32>
    %32 = vector.extract_strided_slice %4 {offsets = [0, 128], sizes = [8, 128], strides = [1, 1]} : vector<8x256xf32> to vector<8x128xf32>
    %33 = arith.mulf %31, %32 : vector<8x128xf32>
    %34 = math.absf %33 : vector<8x128xf32>
    %cst_10 = arith.constant 1.000000e-03 : f32
    %35 = vector.broadcast %cst_10 : f32 to vector<8x128xf32>
    %36 = arith.addf %34, %35 : vector<8x128xf32>
    %37 = tpu.reciprocal %36 {approx = true} : vector<8x128xf32> -> vector<8x128xf32>
    %38 = arith.mulf %33, %37 : vector<8x128xf32>
    %39 = arith.truncf %38 : vector<8x128xf32> to vector<8x128xbf16>
    %c128 = arith.constant 128 : index
    %c0_11 = arith.constant 0 : index
    %40 = vector.load %arg3[%c128, %c0_11] : memref<256x128xbf16, #tpu.memory_space<vmem>>, vector<128x128xbf16>
    %cst_12 = arith.constant dense<0.000000e+00> : vector<8x128xf32>
    %41 = tpu.matmul %39, %40, %cst_12 {dimension_numbers = #tpu.dot_dimension_numbers<[1], [0], [0], [1], [0, 0, 1, 1], [], []>} : vector<8x128xbf16>, vector<128x128xbf16>, vector<8x128xf32> -> vector<8x128xf32>
    %42 = arith.addf %30, %41 : vector<8x128xf32>
    %c0_13 = arith.constant 0 : index
    %c0_14 = arith.constant 0 : index
    %43 = vector.load %arg5[%c0_13, %c0_14] : memref<8x128xf32, #tpu.memory_space<vmem>>, vector<8x128xf32>
    tpu.vector_store %arg5[%c0_13, %c0_14], %42 {strides = array<i32>} : memref<8x128xf32, #tpu.memory_space<vmem>>, vector<8x128xf32>,
    return
  }
  func.func @transform_0(%arg0: i32) -> (i32, i32) {
    %c0_i32 = arith.constant 0 : i32
    %c0_i32_0 = arith.constant 0 : i32
    return %arg0, %c0_i32 : i32, i32
  }
  func.func @transform_1(%arg0: i32) -> (i32, i32) {
    %c0_i32 = arith.constant 0 : i32
    %c0_i32_0 = arith.constant 0 : i32
    %c0_i32_1 = arith.constant 0 : i32
    return %c0_i32, %c0_i32_0 : i32, i32
  }
  func.func @transform_2(%arg0: i32) -> (i32, i32) {
    %c0_i32 = arith.constant 0 : i32
    %c0_i32_0 = arith.constant 0 : i32
    %c0_i32_1 = arith.constant 0 : i32
    return %c0_i32, %c0_i32_0 : i32, i32
  }
  func.func @transform_3(%arg0: i32) -> (i32, i32) {
    %c0_i32 = arith.constant 0 : i32
    %c0_i32_0 = arith.constant 0 : i32
    %c0_i32_1 = arith.constant 0 : i32
    return %c0_i32, %c0_i32_0 : i32, i32
  }
  func.func @transform_4(%arg0: i32) -> (i32, i32) {
    %c0_i32 = arith.constant 0 : i32
    %c0_i32_0 = arith.constant 0 : i32
    return %arg0, %c0_i32 : i32, i32
  }
}

</mosaic_0001>

<llo_original>
// kernel: tpu_custom_call.1
$region0: #{tpu_custom_call.1}
  #allocation0 [shape = 'u32[]', space=smem, size = 0x4, offset = 0x4, fixed_abs, tag = 'smem constant byte address 0x4 - core index']
  #allocation1 [shape = 'u32[144,128]{1,0:T(1,128)}', space=vmem, size = 0x12000, scoped, tag = 'internal scratch']
  %s0 = inlined_call_operand.hbm [shape: bf16[32,128], index: 0, kind: input, shape index: {}]
  %s1 = inlined_call_operand.hbm [shape: bf16[128,384], index: 1, kind: input, shape index: {}]
  %s2 = inlined_call_operand.hbm [shape: bf16[256,128], index: 2, kind: input, shape index: {}]
  %s3 = inlined_call_operand.hbm [shape: bf16[128,128], index: 3, kind: input, shape index: {}]
  %s4 = inlined_call_operand.hbm [shape: f32[16,128], index: 4, kind: output, shape index: {}]
  %s5 = sld [smem:[#allocation0]]
  $region65: #{tpu_custom_call.1} parent=0
    _
  %s7 = ssub.s32 1, %s5
  %s8 = scalar_select 0, %s7, %s5
  $region1: #{tpu_custom_call.1} parent=0
    #allocation2 [shape = 'u8[8192]{0}', space=vmem, size = 0x2000, scoped, tag = 'input window, operand 0']
    #allocation3 [shape = 's32[2]{0}', space=sflag, size = 0x8, scoped, tag = 'scoped memory for tpu_custom_call.1']
    #allocation4 [shape = 's32[2]{0}', space=sflag, size = 0x8, scoped, tag = 'scoped memory for tpu_custom_call.1']
    #allocation5 [shape = 'u8[98304]{0}', space=vmem, size = 0x18000, scoped, tag = 'input window, operand 1, single buffered']
    #allocation6 [shape = 's32[1]{0}', space=sflag, size = 0x4, scoped, tag = 'scoped memory for tpu_custom_call.1']
    #allocation7 [shape = 'u8[65536]{0}', space=vmem, size = 0x10000, scoped, tag = 'input window, operand 2, single buffered']
    #allocation8 [shape = 'u8[32768]{0}', space=vmem, size = 0x8000, scoped, tag = 'input window, operand 3, single buffered']
    #allocation9 [shape = 's32[1]{0}', space=sflag, size = 0x4, scoped, tag = 'scoped memory for tpu_custom_call.1']
    #allocation10 [shape = 'u8[8192]{0}', space=vmem, size = 0x2000, scoped, tag = 'output window, operand 0']
    %9 = vsyncpa [#allocation3], 0
    %s10 = scalar_lea.sflag [#allocation3], 1
    %11 = vsyncpa %s10, 0
    %12 = vsyncpa [#allocation6], 0
    %13 = vsyncpa [#allocation9], 0
    %14 = vsyncpa [#allocation4], 0
    %s15 = scalar_lea.sflag [#allocation4], 1
    %16 = vsyncpa %s15, 0
    loop: start=0, step=1, limit=4
    $region2: #{tpu_custom_call.1} parent=1 // loop_pre_header
      _
    $region3: #{tpu_custom_call.1} parent=1 // loop_header
      %s18 = sphi 0, %s22
      %p19 = scmp.ge.s32.totalorder %s18, 4
      %s28 = sphi 0, %s30
      %s31 = sphi 0, %s28
      %s32 = sphi 0, %s31
      %s48 = sphi 0, %s32
      %s52 = sphi 0, %s52
      %s54 = sphi 0, %s52
      %s55 = sphi 0, %s54
      %s69 = sphi 0, %s55
      %s73 = sphi 0, %s73
      %s75 = sphi 0, %s73
      %s76 = sphi 0, %s75
      %s90 = sphi 0, %s76
      %s94 = sphi 0, %s94
      %s96 = sphi 0, %s94
      %s97 = sphi 0, %s96
      %s111 = sphi 0, %s97
      %s117 = sphi 0, %s119
      %s120 = sphi 0, %s117
      %s121 = sphi 0, %s120
      %s137 = sphi 0, %s121
    $region4: #{tpu_custom_call.1} parent=1 // loop_header_branch
      %21 = sbr.rel (%p19) target = $region8
    $region5: #{tpu_custom_call.1} parent=1 // loop_body
      %s23 = ssub.s32 %s18, 1
      %s24 = ssub.s32 %s18, 2
      %s25 = sadd.s32 %s18, 1
      %s26 = ssub.s32 %s18, %s25
      %p27 = scmp.eq.s32.totalorder %s26, 0
      %s29 = sadd.s32 %s28, 1
      %s30 = scalar_select %p27, %s28, %s29
      %p33 = pneg %p27
      %p34 = scmp.eq.s32.totalorder %s18, 1
      %p35 = por %p33, %p34
      %p36 = scmp.ne.s32.totalorder %s28, %s31
      %p37 = scmp.eq.s32.totalorder %s18, 0
      %p38 = por %p36, %p37
      %p39 = scmp.ne.s32.totalorder %s28, %s31
      %p40 = scmp.eq.s32.totalorder %s23, 1
      %p41 = por %p39, %p40
      %p42 = scmp.ne.s32.totalorder %s31, %s32
      %p43 = scmp.eq.s32.totalorder %s23, 0
      %p44 = por %p42, %p43
      %p45 = scmp.ne.s32.totalorder %s31, %s32
      %p46 = scmp.eq.s32.totalorder %s24, 1
      %p47 = por %p45, %p46
      %p49 = scmp.ne.s32.totalorder %s32, %s48
      %p50 = scmp.eq.s32.totalorder %s24, 0
      %p51 = por %p49, %p50
      %s53 = sadd.s32 %s52, 1
      %p56 = scmp.eq.s32.totalorder %s18, 1
      %p57 = scmp.ne.s32.totalorder %s52, %s54
      %p58 = scmp.eq.s32.totalorder %s18, 0
      %p59 = por %p57, %p58
      %p60 = scmp.ne.s32.totalorder %s52, %s54
      %p61 = scmp.eq.s32.totalorder %s23, 1
      %p62 = por %p60, %p61
      %p63 = scmp.ne.s32.totalorder %s54, %s55
      %p64 = scmp.eq.s32.totalorder %s23, 0
      %p65 = por %p63, %p64
      %p66 = scmp.ne.s32.totalorder %s54, %s55
      %p67 = scmp.eq.s32.totalorder %s24, 1
      %p68 = por %p66, %p67
      %p70 = scmp.ne.s32.totalorder %s55, %s69
      %p71 = scmp.eq.s32.totalorder %s24, 0
      %p72 = por %p70, %p71
      %s74 = sadd.s32 %s73, 1
      %p77 = scmp.eq.s32.totalorder %s18, 1
      %p78 = scmp.ne.s32.totalorder %s73, %s75
      %p79 = scmp.eq.s32.totalorder %s18, 0
      %p80 = por %p78, %p79
      %p81 = scmp.ne.s32.totalorder %s73, %s75
      %p82 = scmp.eq.s32.totalorder %s23, 1
      %p83 = por %p81, %p82
      %p84 = scmp.ne.s32.totalorder %s75, %s76
      %p85 = scmp.eq.s32.totalorder %s23, 0
      %p86 = por %p84, %p85
      %p87 = scmp.ne.s32.totalorder %s75, %s76
      %p88 = scmp.eq.s32.totalorder %s24, 1
      %p89 = por %p87, %p88
      %p91 = scmp.ne.s32.totalorder %s76, %s90
      %p92 = scmp.eq.s32.totalorder %s24, 0
      %p93 = por %p91, %p92
      %s95 = sadd.s32 %s94, 1
      %p98 = scmp.eq.s32.totalorder %s18, 1
      %p99 = scmp.ne.s32.totalorder %s94, %s96
      %p100 = scmp.eq.s32.totalorder %s18, 0
      %p101 = por %p99, %p100
      %p102 = scmp.ne.s32.totalorder %s94, %s96
      %p103 = scmp.eq.s32.totalorder %s23, 1
      %p104 = por %p102, %p103
      %p105 = scmp.ne.s32.totalorder %s96, %s97
      %p106 = scmp.eq.s32.totalorder %s23, 0
      %p107 = por %p105, %p106
      %p108 = scmp.ne.s32.totalorder %s96, %s97
      %p109 = scmp.eq.s32.totalorder %s24, 1
      %p110 = por %p108, %p109
      %p112 = scmp.ne.s32.totalorder %s97, %s111
      %p113 = scmp.eq.s32.totalorder %s24, 0
      %p114 = por %p112, %p113
      %s115 = ssub.s32 %s18, %s25
      %p116 = scmp.eq.s32.totalorder %s115, 0
      %s118 = sadd.s32 %s117, 1
      %s119 = scalar_select %p116, %s117, %s118
      %p122 = pneg %p116
      %p123 = scmp.eq.s32.totalorder %s18, 1
      %p124 = por %p122, %p123
      %p125 = scmp.ne.s32.totalorder %s117, %s120
      %p126 = scmp.eq.s32.totalorder %s18, 0
      %p127 = por %p125, %p126
      %p128 = scmp.ne.s32.totalorder %s117, %s120
      %p129 = scmp.eq.s32.totalorder %s23, 1
      %p130 = por %p128, %p129
      %p131 = scmp.ne.s32.totalorder %s120, %s121
      %p132 = scmp.eq.s32.totalorder %s23, 0
      %p133 = por %p131, %p132
      %p134 = scmp.ne.s32.totalorder %s120, %s121
      %p135 = scmp.eq.s32.totalorder %s24, 1
      %p136 = por %p134, %p135
      %p138 = scmp.ne.s32.totalorder %s121, %s137
      %p139 = scmp.eq.s32.totalorder %s24, 0
      %p140 = por %p138, %p139
      %p141 = scmp.le.s32.totalorder 1, %s18
      %p142 = scmp.lt.s32.totalorder %s18, 3
      %p143 = pnand %p141, %p142
      %p144 = pneg %p143
      // Predicated region
      $region9: #{tpu_custom_call.1} parent=5 // pred_check
        _
      $region10: #{tpu_custom_call.1} parent=5 // pred_check_branch
        %146 = sbr.rel (%p143) target = $region12
      $region11: #{tpu_custom_call.1} parent=5 // pred_region
        %s147 = ssub.s32 %s18, 1
        // Predicated region
        $region13: #{tpu_custom_call.1} parent=11 // pred_check
          %p148 = pneg %p65
        $region14: #{tpu_custom_call.1} parent=11 // pred_check_branch
          %150 = sbr.rel (%p148) target = $region16
        $region15: #{tpu_custom_call.1} parent=11 // pred_region
          %s152 = ssub.s32 3072, 3072
          %153 = vsyncadd [#allocation6], %s152
          %s154 = sshll.u32 [#allocation5], 4
          %s155 = int_to_ptr.vmem [resolvable:$true] %s154
          %160 = dma.hbm_to_vmem [thread:$0]  %s1, 3072, %s155, [#allocation6], 192, 192, 12
        $region16: #{tpu_custom_call.1} parent=11 // pred_fallthru
          _
        // Predicated region
        $region17: #{tpu_custom_call.1} parent=11 // pred_check
          %p161 = pneg %p86
        $region18: #{tpu_custom_call.1} parent=11 // pred_check_branch
          %163 = sbr.rel (%p161) target = $region20
        $region19: #{tpu_custom_call.1} parent=11 // pred_region
          %s165 = ssub.s32 2048, 2048
          %166 = vsyncadd [#allocation6], %s165
          %s167 = sshll.u32 [#allocation7], 4
          %s168 = int_to_ptr.vmem [resolvable:$true] %s167
          %173 = dma.hbm_to_vmem [thread:$0]  %s2, 2048, %s168, [#allocation6], 64, 64, 4
        $region20: #{tpu_custom_call.1} parent=11 // pred_fallthru
          _
        // Predicated region
        $region21: #{tpu_custom_call.1} parent=11 // pred_check
          %p174 = pneg %p107
        $region22: #{tpu_custom_call.1} parent=11 // pred_check_branch
          %176 = sbr.rel (%p174) target = $region24
        $region23: #{tpu_custom_call.1} parent=11 // pred_region
          %s178 = ssub.s32 1024, 1024
          %179 = vsyncadd [#allocation9], %s178
          %s180 = sshll.u32 [#allocation8], 4
          %s181 = int_to_ptr.vmem [resolvable:$true] %s180
          %186 = dma.hbm_to_vmem [thread:$0]  %s3, 1024, %s181, [#allocation9], 64, 64, 4
        $region24: #{tpu_custom_call.1} parent=11 // pred_fallthru
          _
      $region12: #{tpu_custom_call.1} parent=5 // pred_fallthru
        _
      %p187 = scmp.lt.s32.totalorder %s18, 2
      // Predicated region
      $region25: #{tpu_custom_call.1} parent=5 // pred_check
        %p188 = pneg %p187
      $region26: #{tpu_custom_call.1} parent=5 // pred_check_branch
        %190 = sbr.rel (%p188) target = $region28
      $region27: #{tpu_custom_call.1} parent=5 // pred_region
        // Predicated region
        $region29: #{tpu_custom_call.1} parent=27 // pred_check
          %p191 = pneg %p38
        $region30: #{tpu_custom_call.1} parent=27 // pred_check_branch
          %193 = sbr.rel (%p191) target = $region32
        $region31: #{tpu_custom_call.1} parent=27 // pred_region
          %s194 = sand.u32 %s28, 1
          %s195 = scalar_lea.sflag [#allocation3], %s194
          %s196 = sand.u32 %s28, 1
          %s197 = smul.addr %s196, 8
          %s198 = scalar_lea.vmem [#allocation2], %s197
          %s199 = smul.u32 2, %s18
          %s201 = ssub.s32 128, 128
          %202 = vsyncadd %s195, %s201
          %s203 = smul.addr %s199, 64
          %s204 = scalar_lea.hbm %s0, %s203
          %s205 = sshll.u32 %s198, 4
          %s206 = int_to_ptr.vmem [resolvable:$true] %s205
          %211 = dma.hbm_to_vmem [thread:$0]  %s204, 128, %s206, %s195, 64, 64, 4
        $region32: #{tpu_custom_call.1} parent=27 // pred_fallthru
          _
      $region28: #{tpu_custom_call.1} parent=5 // pred_fallthru
        _
      %p212 = scmp.le.s32.totalorder 1, %s18
      %p213 = scmp.lt.s32.totalorder %s18, 3
      %p214 = pnand %p212, %p213
      %p215 = pneg %p214
      // Predicated region
      $region33: #{tpu_custom_call.1} parent=5 // pred_check
        _
      $region34: #{tpu_custom_call.1} parent=5 // pred_check_branch
        %217 = sbr.rel (%p214) target = $region36
      $region35: #{tpu_custom_call.1} parent=5 // pred_region
        %s218 = ssub.s32 %s18, 1
        %s219 = sand.u32 %s31, 1
        %s220 = scalar_lea.sflag [#allocation3], %s219
        %s221 = sand.u32 %s31, 1
        %s222 = smul.addr %s221, 8
        %s223 = scalar_lea.vmem [#allocation2], %s222
        // Predicated region
        $region37: #{tpu_custom_call.1} parent=35 // pred_check
          %p224 = pneg %p44
        $region38: #{tpu_custom_call.1} parent=35 // pred_check_branch
          %226 = sbr.rel (%p224) target = $region40
        $region39: #{tpu_custom_call.1} parent=35 // pred_region
          %227 = dma.done %s220, 128
        $region40: #{tpu_custom_call.1} parent=35 // pred_fallthru
          _
        // Predicated region
        $region41: #{tpu_custom_call.1} parent=35 // pred_check
          %p228 = pneg %p65
        $region42: #{tpu_custom_call.1} parent=35 // pred_check_branch
          %230 = sbr.rel (%p228) target = $region44
        $region43: #{tpu_custom_call.1} parent=35 // pred_region
          %231 = dma.done [#allocation6], 3072
        $region44: #{tpu_custom_call.1} parent=35 // pred_fallthru
          _
        // Predicated region
        $region45: #{tpu_custom_call.1} parent=35 // pred_check
          %p232 = pneg %p86
        $region46: #{tpu_custom_call.1} parent=35 // pred_check_branch
          %234 = sbr.rel (%p232) target = $region48
        $region47: #{tpu_custom_call.1} parent=35 // pred_region
          %235 = dma.done [#allocation6], 2048
        $region48: #{tpu_custom_call.1} parent=35 // pred_fallthru
          _
        // Predicated region
        $region49: #{tpu_custom_call.1} parent=35 // pred_check
          %p236 = pneg %p107
        $region50: #{tpu_custom_call.1} parent=35 // pred_check_branch
          %238 = sbr.rel (%p236) target = $region52
        $region51: #{tpu_custom_call.1} parent=35 // pred_region
          %239 = dma.done [#allocation9], 1024
        $region52: #{tpu_custom_call.1} parent=35 // pred_fallthru
          _
        %s240 = sand.u32 %s31, 1
        %s241 = scalar_lea.sflag [#allocation3], %s240
        %s242 = sand.u32 %s31, 1
        %s243 = smul.addr %s242, 8
        %s244 = scalar_lea.vmem [#allocation2], %s243
        %p245 = pneg %p44
        %p246 = pneg %p41
        %p247 = pneg %p65
        %p248 = pneg %p62
        %p249 = pneg %p86
        %p250 = pneg %p83
        %p251 = pneg %p107
        %p252 = pneg %p104
        %p253 = pneg %p133
        %p254 = pneg %p130
        %s255 = sand.u32 %s120, 1
        %s256 = scalar_lea.sflag [#allocation4], %s255
        %s257 = sand.u32 %s120, 1
        %s258 = smul.addr %s257, 8
        %s259 = scalar_lea.vmem [#allocation10], %s258
        %s260 = smul.u32 2, %s23
        %v262 = vld [vmem:[%s223] sm:$0xf]
        %v263 = vld [vmem:[%s223 + $0x4] sm:$0xf]
        %v264 = vld [vmem:[#allocation5] sm:$0xff]
        %v265 = vld [vmem:[#allocation5 + $0x8] sm:$0xf]
        %v266 = vld [vmem:[#allocation5 + $0xc] sm:$0xff]
        %v267 = vld [vmem:[#allocation5 + $0x14] sm:$0xf]
        %v268 = vld [vmem:[#allocation5 + $0x18] sm:$0xff]
        %v269 = vld [vmem:[#allocation5 + $0x20] sm:$0xf]
        %v270 = vld [vmem:[#allocation5 + $0x24] sm:$0xff]
        %v271 = vld [vmem:[#allocation5 + $0x2c] sm:$0xf]
        %v272 = vld [vmem:[#allocation5 + $0x30] sm:$0xff]
        %v273 = vld [vmem:[#allocation5 + $0x38] sm:$0xf]
        %v274 = vld [vmem:[#allocation5 + $0x3c] sm:$0xff]
        %v275 = vld [vmem:[#allocation5 + $0x44] sm:$0xf]
        %v276 = vld [vmem:[#allocation5 + $0x48] sm:$0xff]
        %v277 = vld [vmem:[#allocation5 + $0x50] sm:$0xf]
        %v278 = vld [vmem:[#allocation5 + $0x54] sm:$0xff]
        %v279 = vld [vmem:[#allocation5 + $0x5c] sm:$0xf]
        %v280 = vld [vmem:[#allocation5 + $0x60] sm:$0xff]
        %v281 = vld [vmem:[#allocation5 + $0x68] sm:$0xf]
        %v282 = vld [vmem:[#allocation5 + $0x6c] sm:$0xff]
        %v283 = vld [vmem:[#allocation5 + $0x74] sm:$0xf]
        %v284 = vld [vmem:[#allocation5 + $0x78] sm:$0xff]
        %v285 = vld [vmem:[#allocation5 + $0x80] sm:$0xf]
        %v286 = vld [vmem:[#allocation5 + $0x84] sm:$0xff]
        %v287 = vld [vmem:[#allocation5 + $0x8c] sm:$0xf]
        %v288 = vld [vmem:[#allocation5 + $0x90] sm:$0xff]
        %v289 = vld [vmem:[#allocation5 + $0x98] sm:$0xf]
        %v290 = vld [vmem:[#allocation5 + $0x9c] sm:$0xff]
        %v291 = vld [vmem:[#allocation5 + $0xa4] sm:$0xf]
        %v292 = vld [vmem:[#allocation5 + $0xa8] sm:$0xff]
        %v293 = vld [vmem:[#allocation5 + $0xb0] sm:$0xf]
        %v294 = vld [vmem:[#allocation5 + $0xb4] sm:$0xff]
        %v295 = vld [vmem:[#allocation5 + $0xbc] sm:$0xf]
        %v298 = vunpack.c.l.b16 %v262
        %v299 = vunpack.c.l.b16 %v263
        %v300 = vpack.c.b16 %v299, %v298
        %v334 = vunpack.c.l.b16 %v264
        %v335 = vunpack.c.h.b16 %v264
        %v336 = vunpack.c.l.b16 %v265
        %v337 = vunpack.c.l.b16 %v266
        %v338 = vunpack.c.h.b16 %v266
        %v339 = vunpack.c.l.b16 %v267
        %v340 = vunpack.c.l.b16 %v268
        %v341 = vunpack.c.h.b16 %v268
        %v342 = vunpack.c.l.b16 %v269
        %v343 = vunpack.c.l.b16 %v270
        %v344 = vunpack.c.h.b16 %v270
        %v345 = vunpack.c.l.b16 %v271
        %v346 = vunpack.c.l.b16 %v272
        %v347 = vunpack.c.h.b16 %v272
        %v348 = vunpack.c.l.b16 %v273
        %v349 = vunpack.c.l.b16 %v274
        %v350 = vunpack.c.h.b16 %v274
        %v351 = vunpack.c.l.b16 %v275
        %v352 = vunpack.c.l.b16 %v276
        %v353 = vunpack.c.h.b16 %v276
        %v354 = vunpack.c.l.b16 %v277
        %v355 = vunpack.c.l.b16 %v278
        %v356 = vunpack.c.h.b16 %v278
        %v357 = vunpack.c.l.b16 %v279
        %v358 = vunpack.c.l.b16 %v280
        %v359 = vunpack.c.h.b16 %v280
        %v360 = vunpack.c.l.b16 %v281
        %v361 = vunpack.c.l.b16 %v282
        %v362 = vunpack.c.h.b16 %v282
        %v363 = vunpack.c.l.b16 %v283
        %v364 = vunpack.c.l.b16 %v284
        %v365 = vunpack.c.h.b16 %v284
        %v366 = vunpack.c.l.b16 %v285
        %v367 = vunpack.c.l.b16 %v286
        %v368 = vunpack.c.h.b16 %v286
        %v369 = vunpack.c.l.b16 %v287
        %v370 = vunpack.c.l.b16 %v288
        %v371 = vunpack.c.h.b16 %v288
        %v372 = vunpack.c.l.b16 %v289
        %v373 = vunpack.c.l.b16 %v290
        %v374 = vunpack.c.h.b16 %v290
        %v375 = vunpack.c.l.b16 %v291
        %v376 = vunpack.c.l.b16 %v292
        %v377 = vunpack.c.h.b16 %v292
        %v378 = vunpack.c.l.b16 %v293
        %v379 = vunpack.c.l.b16 %v294
        %v380 = vunpack.c.h.b16 %v294
        %v381 = vunpack.c.l.b16 %v295
        %v382 = vpack.c.b16 %v337, %v334
        %v383 = vpack.c.b16 %v338, %v335
        %v384 = vpack.c.b16 %v339, %v336
        %v385 = vpack.c.b16 %v343, %v340
        %v386 = vpack.c.b16 %v344, %v341
        %v387 = vpack.c.b16 %v345, %v342
        %v388 = vpack.c.b16 %v349, %v346
        %v389 = vpack.c.b16 %v350, %v347
        %v390 = vpack.c.b16 %v351, %v348
        %v391 = vpack.c.b16 %v355, %v352
        %v392 = vpack.c.b16 %v356, %v353
        %v393 = vpack.c.b16 %v357, %v354
        %v394 = vpack.c.b16 %v361, %v358
        %v395 = vpack.c.b16 %v362, %v359
        %v396 = vpack.c.b16 %v363, %v360
        %v397 = vpack.c.b16 %v367, %v364
        %v398 = vpack.c.b16 %v368, %v365
        %v399 = vpack.c.b16 %v369, %v366
        %v400 = vpack.c.b16 %v373, %v370
        %v401 = vpack.c.b16 %v374, %v371
        %v402 = vpack.c.b16 %v375, %v372
        %v403 = vpack.c.b16 %v379, %v376
        %v404 = vpack.c.b16 %v380, %v377
        %v405 = vpack.c.b16 %v381, %v378
        %430 = vmatprep.subr.bf16.mxu0 %v404
        %431 = vmatpush1.bf16.msra.mxu0 %v403
        %432 = vmatprep.subr.bf16.mxu0 %v401
        %433 = vmatpush1.bf16.msra.mxu0 %v400
        %434 = vmatprep.subr.bf16.mxu0 %v398
        %435 = vmatpush1.bf16.msra.mxu0 %v397
        %436 = vmatprep.subr.bf16.mxu0 %v395
        %437 = vmatpush1.bf16.msra.mxu0 %v394
        %438 = vmatprep.subr.bf16.mxu0 %v392
        %439 = vmatpush1.bf16.msra.mxu0 %v391
        %440 = vmatprep.subr.bf16.mxu0 %v389
        %441 = vmatpush1.bf16.msra.mxu0 %v388
        %442 = vmatprep.subr.bf16.mxu0 %v386
        %443 = vmatpush1.bf16.msra.mxu0 %v385
        %444 = vmatprep.subr.bf16.mxu0 %v383
        %445 = vmatpush1.bf16.msra.mxu0 %v382
        %446 = vmatprep.subr.bf16.mxu0 0
        %447 = vmatpush2.bf16.msra.mxu0 0
        %448 = vmatprep.subr.bf16.mxu0 0
        %449 = vmatpush2.bf16.msra.mxu0 0
        %450 = vmatprep.subr.bf16.mxu0 0
        %451 = vmatpush2.bf16.msra.mxu0 0
        %452 = vmatprep.subr.bf16.mxu0 0
        %453 = vmatpush2.bf16.msra.mxu0 0
        %454 = vmatprep.subr.bf16.mxu0 0
        %455 = vmatpush2.bf16.msra.mxu0 0
        %456 = vmatprep.subr.bf16.mxu0 0
        %457 = vmatpush2.bf16.msra.mxu0 0
        %458 = vmatprep.subr.bf16.mxu0 0
        %459 = vmatpush2.bf16.msra.mxu0 0
        %460 = vmatprep.subr.bf16.mxu0 0
        %461 = vmatpush2.bf16.msra.mxu0 0
        %462 = vmatprep.mubr.bf16.mxu0 0
        %463 = vmatmul.mubr.bf16.gmra.mxu0 %v300
        %v464 = vpop.f32.mrf.mxu0
        %v465 = vadd.f32 0.0, %v464
        %v466 = vpop.f32.mrf.mxu0
        %v467 = vadd.f32 0.0, %v466
        %v468 = vpop.f32.mrf.mxu0
        %v469 = vadd.f32 0.0, %v468
        %v470 = vpop.f32.mrf.mxu0
        %v471 = vadd.f32 0.0, %v470
        %472 = vdwg.mxu0
        %473 = vmatprep.subr.bf16.mxu0 0
        %474 = vmatpush1.bf16.msra.mxu0 %v405
        %475 = vmatprep.subr.bf16.mxu0 0
        %476 = vmatpush1.bf16.msra.mxu0 %v402
        %477 = vmatprep.subr.bf16.mxu0 0
        %478 = vmatpush1.bf16.msra.mxu0 %v399
        %479 = vmatprep.subr.bf16.mxu0 0
        %480 = vmatpush1.bf16.msra.mxu0 %v396
        %481 = vmatprep.subr.bf16.mxu0 0
        %482 = vmatpush1.bf16.msra.mxu0 %v393
        %483 = vmatprep.subr.bf16.mxu0 0
        %484 = vmatpush1.bf16.msra.mxu0 %v390
        %485 = vmatprep.subr.bf16.mxu0 0
        %486 = vmatpush1.bf16.msra.mxu0 %v387
        %487 = vmatprep.subr.bf16.mxu0 0
        %488 = vmatpush1.bf16.msra.mxu0 %v384
        %489 = vmatprep.subr.bf16.mxu0 0
        %490 = vmatpush2.bf16.msra.mxu0 0
        %491 = vmatprep.subr.bf16.mxu0 0
        %492 = vmatpush2.bf16.msra.mxu0 0
        %493 = vmatprep.subr.bf16.mxu0 0
        %494 = vmatpush2.bf16.msra.mxu0 0
        %495 = vmatprep.subr.bf16.mxu0 0
        %496 = vmatpush2.bf16.msra.mxu0 0
        %497 = vmatprep.subr.bf16.mxu0 0
        %498 = vmatpush2.bf16.msra.mxu0 0
        %499 = vmatprep.subr.bf16.mxu0 0
        %500 = vmatpush2.bf16.msra.mxu0 0
        %501 = vmatprep.subr.bf16.mxu0 0
        %502 = vmatpush2.bf16.msra.mxu0 0
        %503 = vmatprep.subr.bf16.mxu0 0
        %504 = vmatpush2.bf16.msra.mxu0 0
        %505 = vmatprep.mubr.bf16.mxu0 0
        %506 = vmatmul.mubr.bf16.gmra.mxu0 %v300
        %v507 = vpop.f32.mrf.mxu0
        %v508 = vadd.f32 0.0, %v507
        %v509 = vpop.f32.mrf.mxu0
        %v510 = vpop.f32.mrf.mxu0
        %v511 = vadd.f32 0.0, %v510
        %v512 = vpop.f32.mrf.mxu0
        %513 = vdwg.mxu0
        %v514 = vmul.f32 %v465, %v469
        %v515 = vmul.f32 %v508, %v511
        %v516 = vadd.f32 %v514, %v515
        %v517 = vmul.f32 %v508, %v469
        %v518 = vmul.f32 %v465, %v511
        %v519 = vsub.f32 %v517, %v518
        %v520 = vmul.f32 %v516, %v516
        %v521 = vmul.f32 %v519, %v519
        %v522 = vadd.f32 %v520, %v521
        %v523 = vrsqrt.pop %v522
        %v524 = vmul.f32 %v522, %v523
        %vm525 = vcmp.eq.f32.partialorder %v522, inf
        %v526 = vsel %vm525, %v522, %v524
        %vm527 = vcmp.eq.f32.partialorder %v522, 0.0
        %v528 = vand.u32 %v522, 2147483648
        %v529 = vsel %vm527, %v528, %v526
        %v530 = vadd.f32 %v529, 0.001
        %v531 = vrcp.pop %v530
        %v532 = vmul.f32 %v516, %v531
        %v533 = vpack.c.bf16 %v532, %v532
        %v534 = vmul.f32 %v519, %v531
        %v535 = vpack.c.bf16 %v534, %v534
        %v536 = vld [vmem:[#allocation7] sm:$0xf]
        %v537 = vld [vmem:[#allocation7 + $0x4] sm:$0xf]
        %v538 = vld [vmem:[#allocation7 + $0x8] sm:$0xf]
        %v539 = vld [vmem:[#allocation7 + $0xc] sm:$0xf]
        %v540 = vld [vmem:[#allocation7 + $0x10] sm:$0xf]
        %v541 = vld [vmem:[#allocation7 + $0x14] sm:$0xf]
        %v542 = vld [vmem:[#allocation7 + $0x18] sm:$0xf]
        %v543 = vld [vmem:[#allocation7 + $0x1c] sm:$0xf]
        %v544 = vld [vmem:[#allocation7 + $0x20] sm:$0xf]
        %v545 = vld [vmem:[#allocation7 + $0x24] sm:$0xf]
        %v546 = vld [vmem:[#allocation7 + $0x28] sm:$0xf]
        %v547 = vld [vmem:[#allocation7 + $0x2c] sm:$0xf]
        %v548 = vld [vmem:[#allocation7 + $0x30] sm:$0xf]
        %v549 = vld [vmem:[#allocation7 + $0x34] sm:$0xf]
        %v550 = vld [vmem:[#allocation7 + $0x38] sm:$0xf]
        %v551 = vld [vmem:[#allocation7 + $0x3c] sm:$0xf]
        %v552 = vld [vmem:[#allocation8] sm:$0xf]
        %v553 = vld [vmem:[#allocation8 + $0x4] sm:$0xf]
        %v554 = vld [vmem:[#allocation8 + $0x8] sm:$0xf]
        %v555 = vld [vmem:[#allocation8 + $0xc] sm:$0xf]
        %v556 = vld [vmem:[#allocation8 + $0x10] sm:$0xf]
        %v557 = vld [vmem:[#allocation8 + $0x14] sm:$0xf]
        %v558 = vld [vmem:[#allocation8 + $0x18] sm:$0xf]
        %v559 = vld [vmem:[#allocation8 + $0x1c] sm:$0xf]
        %v560 = vld [vmem:[#allocation8 + $0x20] sm:$0xf]
        %v561 = vld [vmem:[#allocation8 + $0x24] sm:$0xf]
        %v562 = vld [vmem:[#allocation8 + $0x28] sm:$0xf]
        %v563 = vld [vmem:[#allocation8 + $0x2c] sm:$0xf]
        %v564 = vld [vmem:[#allocation8 + $0x30] sm:$0xf]
        %v565 = vld [vmem:[#allocation8 + $0x34] sm:$0xf]
        %v566 = vld [vmem:[#allocation8 + $0x38] sm:$0xf]
        %v567 = vld [vmem:[#allocation8 + $0x3c] sm:$0xf]
        %v584 = vunpack.c.l.b16 %v552
        %v585 = vunpack.c.l.b16 %v553
        %v586 = vunpack.c.l.b16 %v554
        %v587 = vunpack.c.l.b16 %v555
        %v588 = vunpack.c.l.b16 %v556
        %v589 = vunpack.c.l.b16 %v557
        %v590 = vunpack.c.l.b16 %v558
        %v591 = vunpack.c.l.b16 %v559
        %v592 = vunpack.c.l.b16 %v560
        %v593 = vunpack.c.l.b16 %v561
        %v594 = vunpack.c.l.b16 %v562
        %v595 = vunpack.c.l.b16 %v563
        %v596 = vunpack.c.l.b16 %v564
        %v597 = vunpack.c.l.b16 %v565
        %v598 = vunpack.c.l.b16 %v566
        %v599 = vunpack.c.l.b16 %v567
        %v600 = vpack.c.b16 %v585, %v584
        %v601 = vpack.c.b16 %v587, %v586
        %v602 = vpack.c.b16 %v589, %v588
        %v603 = vpack.c.b16 %v591, %v590
        %v604 = vpack.c.b16 %v593, %v592
        %v605 = vpack.c.b16 %v595, %v594
        %v606 = vpack.c.b16 %v597, %v596
        %v607 = vpack.c.b16 %v599, %v598
        %616 = vmatprep.subr.bf16.mxu0 0
        %617 = vmatpush1.bf16.msra.mxu0 %v607
        %618 = vmatprep.subr.bf16.mxu0 0
        %619 = vmatpush1.bf16.msra.mxu0 %v606
        %620 = vmatprep.subr.bf16.mxu0 0
        %621 = vmatpush1.bf16.msra.mxu0 %v605
        %622 = vmatprep.subr.bf16.mxu0 0
        %623 = vmatpush1.bf16.msra.mxu0 %v604
        %624 = vmatprep.subr.bf16.mxu0 0
        %625 = vmatpush1.bf16.msra.mxu0 %v603
        %626 = vmatprep.subr.bf16.mxu0 0
        %627 = vmatpush1.bf16.msra.mxu0 %v602
        %628 = vmatprep.subr.bf16.mxu0 0
        %629 = vmatpush1.bf16.msra.mxu0 %v601
        %630 = vmatprep.subr.bf16.mxu0 0
        %631 = vmatpush1.bf16.msra.mxu0 %v600
        %632 = vmatprep.subr.bf16.mxu0 0
        %633 = vmatpush2.bf16.msra.mxu0 0
        %634 = vmatprep.subr.bf16.mxu0 0
        %635 = vmatpush2.bf16.msra.mxu0 0
        %636 = vmatprep.subr.bf16.mxu0 0
        %637 = vmatpush2.bf16.msra.mxu0 0
        %638 = vmatprep.subr.bf16.mxu0 0
        %639 = vmatpush2.bf16.msra.mxu0 0
        %640 = vmatprep.subr.bf16.mxu0 0
        %641 = vmatpush2.bf16.msra.mxu0 0
        %642 = vmatprep.subr.bf16.mxu0 0
        %643 = vmatpush2.bf16.msra.mxu0 0
        %644 = vmatprep.subr.bf16.mxu0 0
        %645 = vmatpush2.bf16.msra.mxu0 0
        %646 = vmatprep.subr.bf16.mxu0 0
        %647 = vmatpush2.bf16.msra.mxu0 0
        %648 = vmatprep.mubr.bf16.mxu0 0
        %649 = vmatmul.mubr.bf16.gmra.mxu0 %v535
        %v650 = vpop.f32.mrf.mxu0
        %v651 = vadd.f32 0.0, %v650
        %v652 = vpop.f32.mrf.mxu0
        %v653 = vpop.f32.mrf.mxu0
        %v654 = vpop.f32.mrf.mxu0
        %655 = vdwg.mxu0
        %v672 = vunpack.c.l.b16 %v536
        %v673 = vunpack.c.l.b16 %v537
        %v674 = vunpack.c.l.b16 %v538
        %v675 = vunpack.c.l.b16 %v539
        %v676 = vunpack.c.l.b16 %v540
        %v677 = vunpack.c.l.b16 %v541
        %v678 = vunpack.c.l.b16 %v542
        %v679 = vunpack.c.l.b16 %v543
        %v680 = vunpack.c.l.b16 %v544
        %v681 = vunpack.c.l.b16 %v545
        %v682 = vunpack.c.l.b16 %v546
        %v683 = vunpack.c.l.b16 %v547
        %v684 = vunpack.c.l.b16 %v548
        %v685 = vunpack.c.l.b16 %v549
        %v686 = vunpack.c.l.b16 %v550
        %v687 = vunpack.c.l.b16 %v551
        %v688 = vpack.c.b16 %v673, %v672
        %v689 = vpack.c.b16 %v675, %v674
        %v690 = vpack.c.b16 %v677, %v676
        %v691 = vpack.c.b16 %v679, %v678
        %v692 = vpack.c.b16 %v681, %v680
        %v693 = vpack.c.b16 %v683, %v682
        %v694 = vpack.c.b16 %v685, %v684
        %v695 = vpack.c.b16 %v687, %v686
        %704 = vmatprep.subr.bf16.mxu0 0
        %705 = vmatpush1.bf16.msra.mxu0 %v695
        %706 = vmatprep.subr.bf16.mxu0 0
        %707 = vmatpush1.bf16.msra.mxu0 %v694
        %708 = vmatprep.subr.bf16.mxu0 0
        %709 = vmatpush1.bf16.msra.mxu0 %v693
        %710 = vmatprep.subr.bf16.mxu0 0
        %711 = vmatpush1.bf16.msra.mxu0 %v692
        %712 = vmatprep.subr.bf16.mxu0 0
        %713 = vmatpush1.bf16.msra.mxu0 %v691
        %714 = vmatprep.subr.bf16.mxu0 0
        %715 = vmatpush1.bf16.msra.mxu0 %v690
        %716 = vmatprep.subr.bf16.mxu0 0
        %717 = vmatpush1.bf16.msra.mxu0 %v689
        %718 = vmatprep.subr.bf16.mxu0 0
        %719 = vmatpush1.bf16.msra.mxu0 %v688
        %720 = vmatprep.subr.bf16.mxu0 0
        %721 = vmatpush2.bf16.msra.mxu0 0
        %722 = vmatprep.subr.bf16.mxu0 0
        %723 = vmatpush2.bf16.msra.mxu0 0
        %724 = vmatprep.subr.bf16.mxu0 0
        %725 = vmatpush2.bf16.msra.mxu0 0
        %726 = vmatprep.subr.bf16.mxu0 0
        %727 = vmatpush2.bf16.msra.mxu0 0
        %728 = vmatprep.subr.bf16.mxu0 0
        %729 = vmatpush2.bf16.msra.mxu0 0
        %730 = vmatprep.subr.bf16.mxu0 0
        %731 = vmatpush2.bf16.msra.mxu0 0
        %732 = vmatprep.subr.bf16.mxu0 0
        %733 = vmatpush2.bf16.msra.mxu0 0
        %734 = vmatprep.subr.bf16.mxu0 0
        %735 = vmatpush2.bf16.msra.mxu0 0
        %736 = vmatprep.mubr.bf16.mxu0 0
        %737 = vmatmul.mubr.bf16.gmra.mxu0 %v533
        %v738 = vpop.f32.mrf.mxu0
        %v739 = vadd.f32 %v651, %v738
        %v740 = vpop.f32.mrf.mxu0
        %v741 = vpop.f32.mrf.mxu0
        %v742 = vpop.f32.mrf.mxu0
        %743 = vdwg.mxu0
        %v744 = vmul.f32 %v467, %v471
        %v745 = vand.u32 2147483647, %v744
        %v746 = vadd.f32 %v745, 0.001
        %v747 = vrcp.pop %v746
        %v748 = vmul.f32 %v744, %v747
        %v749 = vpack.c.bf16 %v748, %v748
        %v750 = vld [vmem:[#allocation7 + $0x40] sm:$0xf]
        %v751 = vld [vmem:[#allocation7 + $0x44] sm:$0xf]
        %v752 = vld [vmem:[#allocation7 + $0x48] sm:$0xf]
        %v753 = vld [vmem:[#allocation7 + $0x4c] sm:$0xf]
        %v754 = vld [vmem:[#allocation7 + $0x50] sm:$0xf]
        %v755 = vld [vmem:[#allocation7 + $0x54] sm:$0xf]
        %v756 = vld [vmem:[#allocation7 + $0x58] sm:$0xf]
        %v757 = vld [vmem:[#allocation7 + $0x5c] sm:$0xf]
        %v758 = vld [vmem:[#allocation7 + $0x60] sm:$0xf]
        %v759 = vld [vmem:[#allocation7 + $0x64] sm:$0xf]
        %v760 = vld [vmem:[#allocation7 + $0x68] sm:$0xf]
        %v761 = vld [vmem:[#allocation7 + $0x6c] sm:$0xf]
        %v762 = vld [vmem:[#allocation7 + $0x70] sm:$0xf]
        %v763 = vld [vmem:[#allocation7 + $0x74] sm:$0xf]
        %v764 = vld [vmem:[#allocation7 + $0x78] sm:$0xf]
        %v765 = vld [vmem:[#allocation7 + $0x7c] sm:$0xf]
        %v782 = vunpack.c.l.b16 %v750
        %v783 = vunpack.c.l.b16 %v751
        %v784 = vunpack.c.l.b16 %v752
        %v785 = vunpack.c.l.b16 %v753
        %v786 = vunpack.c.l.b16 %v754
        %v787 = vunpack.c.l.b16 %v755
        %v788 = vunpack.c.l.b16 %v756
        %v789 = vunpack.c.l.b16 %v757
        %v790 = vunpack.c.l.b16 %v758
        %v791 = vunpack.c.l.b16 %v759
        %v792 = vunpack.c.l.b16 %v760
        %v793 = vunpack.c.l.b16 %v761
        %v794 = vunpack.c.l.b16 %v762
        %v795 = vunpack.c.l.b16 %v763
        %v796 = vunpack.c.l.b16 %v764
        %v797 = vunpack.c.l.b16 %v765
        %v798 = vpack.c.b16 %v783, %v782
        %v799 = vpack.c.b16 %v785, %v784
        %v800 = vpack.c.b16 %v787, %v786
        %v801 = vpack.c.b16 %v789, %v788
        %v802 = vpack.c.b16 %v791, %v790
        %v803 = vpack.c.b16 %v793, %v792
        %v804 = vpack.c.b16 %v795, %v794
        %v805 = vpack.c.b16 %v797, %v796
        %814 = vmatprep.subr.bf16.mxu0 0
        %815 = vmatpush1.bf16.msra.mxu0 %v805
        %816 = vmatprep.subr.bf16.mxu0 0
        %817 = vmatpush1.bf16.msra.mxu0 %v804
        %818 = vmatprep.subr.bf16.mxu0 0
        %819 = vmatpush1.bf16.msra.mxu0 %v803
        %820 = vmatprep.subr.bf16.mxu0 0
        %821 = vmatpush1.bf16.msra.mxu0 %v802
        %822 = vmatprep.subr.bf16.mxu0 0
        %823 = vmatpush1.bf16.msra.mxu0 %v801
        %824 = vmatprep.subr.bf16.mxu0 0
        %825 = vmatpush1.bf16.msra.mxu0 %v800
        %826 = vmatprep.subr.bf16.mxu0 0
        %827 = vmatpush1.bf16.msra.mxu0 %v799
        %828 = vmatprep.subr.bf16.mxu0 0
        %829 = vmatpush1.bf16.msra.mxu0 %v798
        %830 = vmatprep.subr.bf16.mxu0 0
        %831 = vmatpush2.bf16.msra.mxu0 0
        %832 = vmatprep.subr.bf16.mxu0 0
        %833 = vmatpush2.bf16.msra.mxu0 0
        %834 = vmatprep.subr.bf16.mxu0 0
        %835 = vmatpush2.bf16.msra.mxu0 0
        %836 = vmatprep.subr.bf16.mxu0 0
        %837 = vmatpush2.bf16.msra.mxu0 0
        %838 = vmatprep.subr.bf16.mxu0 0
        %839 = vmatpush2.bf16.msra.mxu0 0
        %840 = vmatprep.subr.bf16.mxu0 0
        %841 = vmatpush2.bf16.msra.mxu0 0
        %842 = vmatprep.subr.bf16.mxu0 0
        %843 = vmatpush2.bf16.msra.mxu0 0
        %844 = vmatprep.subr.bf16.mxu0 0
        %845 = vmatpush2.bf16.msra.mxu0 0
        %846 = vmatprep.mubr.bf16.mxu0 0
        %847 = vmatmul.mubr.bf16.gmra.mxu0 %v749
        %v848 = vpop.f32.mrf.mxu0
        %v849 = vadd.f32 0.0, %v848
        %v850 = vpop.f32.mrf.mxu0
        %v851 = vpop.f32.mrf.mxu0
        %v852 = vpop.f32.mrf.mxu0
        %853 = vdwg.mxu0
        %v854 = vadd.f32 %v739, %v849
        %855 = vst [vmem:[%s259] sm:$0xff] %v854
        %s856 = sand.u32 %s120, 1
        %s857 = scalar_lea.sflag [#allocation4], %s856
        %s858 = sand.u32 %s120, 1
        %s859 = smul.addr %s858, 8
        %s860 = scalar_lea.vmem [#allocation10], %s859
        // Predicated region
        $region53: #{tpu_custom_call.1} parent=35 // pred_check
          %p861 = pneg %p130
        $region54: #{tpu_custom_call.1} parent=35 // pred_check_branch
          %863 = sbr.rel (%p861) target = $region56
        $region55: #{tpu_custom_call.1} parent=35 // pred_region
          %s865 = ssub.s32 128, 128
          %866 = vsyncadd %s857, %s865
          %s867 = smul.addr %s23, 128
          %s868 = scalar_lea.hbm %s4, %s867
          %s870 = sshll.u32 %s860, 4
          %s871 = int_to_ptr.vmem [resolvable:$true] %s870
          %873 = dma.vmem_to_hbm [thread:$0]  %s871, 128, %s868, %s857
        $region56: #{tpu_custom_call.1} parent=35 // pred_fallthru
          _
      $region36: #{tpu_custom_call.1} parent=5 // pred_fallthru
        _
      %p874 = scmp.le.s32.totalorder 2, %s18
      // Predicated region
      $region57: #{tpu_custom_call.1} parent=5 // pred_check
        %p875 = pneg %p874
      $region58: #{tpu_custom_call.1} parent=5 // pred_check_branch
        %877 = sbr.rel (%p875) target = $region60
      $region59: #{tpu_custom_call.1} parent=5 // pred_region
        %s878 = ssub.s32 %s18, 2
        // Predicated region
        $region61: #{tpu_custom_call.1} parent=59 // pred_check
          %p879 = pneg %p136
        $region62: #{tpu_custom_call.1} parent=59 // pred_check_branch
          %881 = sbr.rel (%p879) target = $region64
        $region63: #{tpu_custom_call.1} parent=59 // pred_region
          %s882 = sand.u32 %s121, 1
          %s883 = scalar_lea.sflag [#allocation4], %s882
          %s884 = sand.u32 %s121, 1
          %s885 = smul.addr %s884, 8
          %s886 = scalar_lea.vmem [#allocation10], %s885
          %887 = dma.done %s883, 128
        $region64: #{tpu_custom_call.1} parent=59 // pred_fallthru
          _
      $region60: #{tpu_custom_call.1} parent=5 // pred_fallthru
        _
    $region6: #{tpu_custom_call.1} parent=1 // loop_footer
      %s22 = sadd.s32 1, %s18
    $region7: #{tpu_custom_call.1} parent=1 // loop_footer_branch
      %17 = sbr.rel target = $region3
    $region8: #{tpu_custom_call.1} parent=1 // loop_exit
      _
    %888 = vsyncpa [#allocation3], 1
    %s889 = scalar_lea.sflag [#allocation3], 1
    %890 = vsyncpa %s889, 1
    %891 = vsyncpa [#allocation6], 1
    %892 = vsyncpa [#allocation9], 1
    %893 = vsyncpa [#allocation4], 1
    %s894 = scalar_lea.sflag [#allocation4], 1
    %895 = vsyncpa %s894, 1

</llo_original>
